<compile_context>
chip_gen: v7x
topology: tpu7x:2x2x1
jax: 0.10.0
libtpu: 0.0.40
codegen_flags: <defaults>
</compile_context>

<pallas_src>
import jax
import jax.numpy as jnp
from jax import lax
from jax.experimental import pallas as pl
from jax.experimental.pallas import tpu as pltpu

EMBEDDING_DIM = 10
NUM_USERS = 5
NUM_ITEMS = 3
H1 = 64
H2 = 32
TILE_B = 16384  # ~7 MB of per-tile VMEM; fits v5e/v6e/v7x scoped defaults


def ncf_kernel(ids_ref, t1_ref, w2t_ref, b2_ref, w3t_ref, b3_ref, out_ref):
    tb = ids_ref.shape[1]

    packed = ids_ref[...]                               # (1, TB) int32: uid | iid<<16
    uid = packed & 0xFFFF                               # (1, TB)
    iid_row = (packed >> 16) + NUM_USERS                # (1, TB) row index in merged table

    # merged one-hot: one user row AND one item row set per column
    iota = lax.broadcasted_iota(jnp.int32, (NUM_USERS + NUM_ITEMS, tb), 0)
    onehot = jnp.logical_or(iota == uid, iota == iid_row).astype(jnp.float32)

    # fc1: embedding lookup + linear + bias all folded into one (H1, 8) table
    h1 = jnp.dot(t1_ref[...], onehot, preferred_element_type=jnp.float32)  # (H1, TB)
    h1 = jnp.maximum(h1, 0.0)

    # fc2
    h2 = jnp.dot(w2t_ref[...], h1, preferred_element_type=jnp.float32) + b2_ref[...]
    h2 = jnp.maximum(h2, 0.0)                           # (H2, TB)

    # output projection (N = TB, lane-dense store)
    out = jnp.dot(w3t_ref[...], h2, preferred_element_type=jnp.float32) + b3_ref[...]
    out_ref[...] = out                                  # (1, TB)


def ncf_forward(user_ids, item_ids, params, tile_b=TILE_B):
    B = user_ids.shape[0]

    # Lane-aligned batch tile.  For moderate batches split into >=2 grid steps
    # so the "parallel" axis can shard across both v7x TensorCores.
    b_ceil = pl.cdiv(B, 128) * 128
    if b_ceil > 128:
        tb = min(tile_b, pl.cdiv(pl.cdiv(B, 2), 128) * 128)
    else:
        tb = 128
    b_pad = pl.cdiv(B, tb) * tb
    grid = (b_pad // tb,)

    # pack uid/iid into one int32 per element; pad with valid id 0 (discarded)
    ids = (user_ids.astype(jnp.int32) |
           (item_ids.astype(jnp.int32) << 16)).reshape(1, B)
    ids = jnp.pad(ids, ((0, 0), (0, b_pad - B)))        # (1, b_pad)

    # fold embedding tables + b1 into a single feature-major fc1 table
    tu = (params["user_emb"] @ params["w1u"] + params["b1"]).T   # (H1, num_users), b1 folded
    ti = (params["item_emb"] @ params["w1i"]).T                  # (H1, num_items)
    t1 = jnp.concatenate([tu, ti], axis=1)                       # (H1, 8)
    w2t = params["w2"].T                                         # (H2, H1)
    b2 = params["b2"].T                                          # (H2, 1)
    w3t = params["w3"].T                                         # (1, H2)
    b3 = params["b3"].T                                          # (1, 1)

    const = lambda i: (0, 0)
    out = pl.pallas_call(
        ncf_kernel,
        out_shape=jax.ShapeDtypeStruct((1, b_pad), jnp.float32),
        grid=grid,
        in_specs=[
            pl.BlockSpec((1, tb), lambda i: (0, i)),             # packed ids (tiled)
            pl.BlockSpec((H1, NUM_USERS + NUM_ITEMS), const),    # merged fc1 table
            pl.BlockSpec((H2, H1), const),                       # W2^T
            pl.BlockSpec((H2, 1), const),                        # b2
            pl.BlockSpec((1, H2), const),                        # W3^T
            pl.BlockSpec((1, 1), const),                         # b3
        ],
        out_specs=pl.BlockSpec((1, tb), lambda i: (0, i)),
        compiler_params=pltpu.CompilerParams(
            dimension_semantics=("parallel",)),
    )(ids, t1, w2t, b2, w3t, b3)

    return out[0, :B]                                            # (B,)


def init_params(key):
    ks = jax.random.split(key, 8)
    D = EMBEDDING_DIM

    def linear(kw, kb, fan_in, fan_out):
        bound = 1.0 / jnp.sqrt(fan_in)
        w = jax.random.uniform(kw, (fan_in, fan_out), jnp.float32, -bound, bound)
        b = jax.random.uniform(kb, (1, fan_out), jnp.float32, -bound, bound)
        return w, b

    user_emb = jax.random.normal(ks[0], (NUM_USERS, D), jnp.float32)
    item_emb = jax.random.normal(ks[1], (NUM_ITEMS, D), jnp.float32)
    w1, b1 = linear(ks[2], ks[3], 2 * D, H1)
    w2, b2 = linear(ks[4], ks[5], H1, H2)
    w3, b3 = linear(ks[6], ks[7], H2, 1)

    return dict(user_emb=user_emb, item_emb=item_emb,
                w1u=w1[:D, :], w1i=w1[D:, :], b1=b1,
                w2=w2, b2=b2, w3=w3, b3=b3)


def ncf_reference(user_ids, item_ids, params):
    u = params["user_emb"][user_ids]
    i = params["item_emb"][item_ids]
    x = jnp.concatenate([u, i], axis=1)
    w1 = jnp.concatenate([params["w1u"], params["w1i"]], axis=0)
    h1 = jnp.maximum(x @ w1 + params["b1"], 0.0)
    h2 = jnp.maximum(h1 @ params["w2"] + params["b2"], 0.0)
    return (h2 @ params["w3"] + params["b3"]).squeeze(1)


if __name__ == "__main__":
    key = jax.random.PRNGKey(0)
    params = init_params(key)

    # same synthetic interaction data as the PyTorch script
    user_ids = jnp.array([0, 0, 1, 1, 2, 3, 3, 4, 4, 4], dtype=jnp.int32)
    item_ids = jnp.array([0, 1, 1, 2, 2, 0, 2, 0, 1, 2], dtype=jnp.int32)

    out = ncf_forward(user_ids, item_ids, params)
    out = jax.block_until_ready(out)

    ref = ncf_reference(user_ids, item_ids, params)
    assert out.shape == (user_ids.shape[0],)
    assert jnp.allclose(out, ref, atol=1e-4, rtol=1e-5)

    # also exercise the multi-tile (>=2 "parallel" steps) grid path
    kb = jax.random.split(key, 2)
    big_u = jax.random.randint(kb[0], (3000,), 0, NUM_USERS, dtype=jnp.int32)
    big_i = jax.random.randint(kb[1], (3000,), 0, NUM_ITEMS, dtype=jnp.int32)
    big_out = jax.block_until_ready(ncf_forward(big_u, big_i, params))
    big_ref = ncf_reference(big_u, big_i, params)
    assert big_out.shape == (3000,)
    assert jnp.allclose(big_out, big_ref, atol=1e-4, rtol=1e-5)

    print("KERNEL_OK")
</pallas_src>

<mosaic_0001>
module attributes {stable_mosaic.version = 11 : i64} {
  func.func @ncf_kernel(%arg0: i32, %arg1: memref<1x128xi32, #tpu.memory_space<vmem>>, %arg2: memref<64x8xf32, #tpu.memory_space<vmem>>, %arg3: memref<32x64xf32, #tpu.memory_space<vmem>>, %arg4: memref<32x1xf32, #tpu.memory_space<vmem>>, %arg5: memref<1x32xf32, #tpu.memory_space<vmem>>, %arg6: memref<1x1xf32, #tpu.memory_space<vmem>>, %arg7: memref<1x128xf32, #tpu.memory_space<vmem>>) attributes {dimension_semantics = [#tpu.dimension_semantics<parallel>], iteration_bounds = array<i64: 1>, scalar_prefetch = 0 : i64, scratch_operands = 0 : i64, tpu.core_type = #tpu.core_type<tc>, window_params = [{transform_indices = @transform_0, window_bounds = array<i64: 1, 128>}, {pipeline_mode = #tpu.pipeline_mode<synchronous>, transform_indices = @transform_1, window_bounds = array<i64: 64, 8>}, {pipeline_mode = #tpu.pipeline_mode<synchronous>, transform_indices = @transform_2, window_bounds = array<i64: 32, 64>}, {pipeline_mode = #tpu.pipeline_mode<synchronous>, transform_indices = @transform_3, window_bounds = array<i64: 32, 1>}, {pipeline_mode = #tpu.pipeline_mode<synchronous>, transform_indices = @transform_4, window_bounds = array<i64: 1, 32>}, {pipeline_mode = #tpu.pipeline_mode<synchronous>, transform_indices = @transform_5, window_bounds = array<i64: 1, 1>}, {transform_indices = @transform_6, window_bounds = array<i64: 1, 128>}]} {
    %c0 = arith.constant 0 : index
    %c0_0 = arith.constant 0 : index
    %0 = vector.load %arg1[%c0, %c0_0] : memref<1x128xi32, #tpu.memory_space<vmem>>, vector<1x128xi32>
    %c65535_i32 = arith.constant 65535 : i32
    %1 = vector.broadcast %c65535_i32 : i32 to vector<1x128xi32>
    %2 = arith.andi %0, %1 : vector<1x128xi32>
    %c16_i32 = arith.constant 16 : i32
    %3 = vector.broadcast %c16_i32 : i32 to vector<1x128xi32>
    %4 = arith.shrsi %0, %3 : vector<1x128xi32>
    %c5_i32 = arith.constant 5 : i32
    %5 = vector.broadcast %c5_i32 : i32 to vector<1x128xi32>
    %6 = arith.addi %4, %5 : vector<1x128xi32>
    %7 = tpu.iota {dimensions = array<i32: 0>} : vector<8x128xi32>
    %8 = vector.broadcast %2 : vector<1x128xi32> to vector<8x128xi32>
    %9 = arith.cmpi eq, %7, %8 : vector<8x128xi32>
    %10 = vector.broadcast %6 : vector<1x128xi32> to vector<8x128xi32>
    %11 = arith.cmpi eq, %7, %10 : vector<8x128xi32>
    %12 = arith.ori %9, %11 : vector<8x128xi1>
    %13 = arith.extui %12 : vector<8x128xi1> to vector<8x128xi32>
    %14 = arith.sitofp %13 : vector<8x128xi32> to vector<8x128xf32>
    %c0_1 = arith.constant 0 : index
    %c0_2 = arith.constant 0 : index
    %15 = vector.load %arg2[%c0_1, %c0_2] : memref<64x8xf32, #tpu.memory_space<vmem>>, vector<64x8xf32>
    %cst = arith.constant dense<0.000000e+00> : vector<64x128xf32>
    %16 = tpu.matmul %15, %14, %cst {dimension_numbers = #tpu.dot_dimension_numbers<[1], [0], [0], [1], [0, 0, 1, 1], [], []>} : vector<64x8xf32>, vector<8x128xf32>, vector<64x128xf32> -> vector<64x128xf32>
    %cst_3 = arith.constant 0.000000e+00 : f32
    %17 = vector.broadcast %cst_3 : f32 to vector<64x128xf32>
    %18 = arith.maximumf %16, %17 : vector<64x128xf32>
    %c0_4 = arith.constant 0 : index
    %c0_5 = arith.constant 0 : index
    %19 = vector.load %arg3[%c0_4, %c0_5] : memref<32x64xf32, #tpu.memory_space<vmem>>, vector<32x64xf32>
    %cst_6 = arith.constant dense<0.000000e+00> : vector<32x128xf32>
    %20 = tpu.matmul %19, %18, %cst_6 {dimension_numbers = #tpu.dot_dimension_numbers<[1], [0], [0], [1], [0, 0, 1, 1], [], []>} : vector<32x64xf32>, vector<64x128xf32>, vector<32x128xf32> -> vector<32x128xf32>
    %c0_7 = arith.constant 0 : index
    %c0_8 = arith.constant 0 : index
    %21 = vector.load %arg4[%c0_7, %c0_8] : memref<32x1xf32, #tpu.memory_space<vmem>>, vector<32x1xf32>
    %22 = vector.broadcast %21 : vector<32x1xf32> to vector<32x128xf32>
    %23 = arith.addf %20, %22 : vector<32x128xf32>
    %cst_9 = arith.constant 0.000000e+00 : f32
    %24 = vector.broadcast %cst_9 : f32 to vector<32x128xf32>
    %25 = arith.maximumf %23, %24 : vector<32x128xf32>
    %c0_10 = arith.constant 0 : index
    %c0_11 = arith.constant 0 : index
    %26 = vector.load %arg5[%c0_10, %c0_11] : memref<1x32xf32, #tpu.memory_space<vmem>>, vector<1x32xf32>
    %cst_12 = arith.constant dense<0.000000e+00> : vector<1x128xf32>
    %27 = tpu.matmul %26, %25, %cst_12 {dimension_numbers = #tpu.dot_dimension_numbers<[1], [0], [0], [1], [0, 0, 1, 1], [], []>} : vector<1x32xf32>, vector<32x128xf32>, vector<1x128xf32> -> vector<1x128xf32>
    %c0_13 = arith.constant 0 : index
    %c0_14 = arith.constant 0 : index
    %28 = vector.load %arg6[%c0_13, %c0_14] : memref<1x1xf32, #tpu.memory_space<vmem>>, vector<1x1xf32>
    %29 = vector.broadcast %28 : vector<1x1xf32> to vector<1x128xf32>
    %30 = arith.addf %27, %29 : vector<1x128xf32>
    %c0_15 = arith.constant 0 : index
    %c0_16 = arith.constant 0 : index
    %31 = vector.load %arg7[%c0_15, %c0_16] : memref<1x128xf32, #tpu.memory_space<vmem>>, vector<1x128xf32>
    tpu.vector_store %arg7[%c0_15, %c0_16], %30 {strides = array<i32>} : memref<1x128xf32, #tpu.memory_space<vmem>>, vector<1x128xf32>,
    return
  }
  func.func @transform_0(%arg0: i32) -> (i32, i32) {
    %c0_i32 = arith.constant 0 : i32
    %c0_i32_0 = arith.constant 0 : i32
    return %c0_i32, %arg0 : i32, i32
  }
  func.func @transform_1(%arg0: i32) -> (i32, i32) {
    %c0_i32 = arith.constant 0 : i32
    %c0_i32_0 = arith.constant 0 : i32
    %c0_i32_1 = arith.constant 0 : i32
    return %c0_i32, %c0_i32_0 : i32, i32
  }
  func.func @transform_2(%arg0: i32) -> (i32, i32) {
    %c0_i32 = arith.constant 0 : i32
    %c0_i32_0 = arith.constant 0 : i32
    %c0_i32_1 = arith.constant 0 : i32
    return %c0_i32, %c0_i32_0 : i32, i32
  }
  func.func @transform_3(%arg0: i32) -> (i32, i32) {
    %c0_i32 = arith.constant 0 : i32
    %c0_i32_0 = arith.constant 0 : i32
    %c0_i32_1 = arith.constant 0 : i32
    return %c0_i32, %c0_i32_0 : i32, i32
  }
  func.func @transform_4(%arg0: i32) -> (i32, i32) {
    %c0_i32 = arith.constant 0 : i32
    %c0_i32_0 = arith.constant 0 : i32
    %c0_i32_1 = arith.constant 0 : i32
    return %c0_i32, %c0_i32_0 : i32, i32
  }
  func.func @transform_5(%arg0: i32) -> (i32, i32) {
    %c0_i32 = arith.constant 0 : i32
    %c0_i32_0 = arith.constant 0 : i32
    %c0_i32_1 = arith.constant 0 : i32
    return %c0_i32, %c0_i32_0 : i32, i32
  }
  func.func @transform_6(%arg0: i32) -> (i32, i32) {
    %c0_i32 = arith.constant 0 : i32
    %c0_i32_0 = arith.constant 0 : i32
    return %c0_i32, %arg0 : i32, i32
  }
}

</mosaic_0001>

<llo_original>
// kernel: tpu_custom_call.1
$region0: #{tpu_custom_call.1}
  #allocation0 [shape = 'u32[]', space=smem, size = 0x4, offset = 0x4, fixed_abs, tag = 'smem constant byte address 0x4 - core index']
  #allocation1 [shape = 'u32[144,128]{1,0:T(1,128)}', space=vmem, size = 0x12000, scoped, tag = 'internal scratch']
  #allocation2 [shape = 'f32[1,1]{1,0:T(1,128)S(1)}', space=vmem, size = 0x200, scoped, tag = 'scoped memory for tpu_custom_call.1']
  %s0 = inlined_call_operand.vmem [shape: s32[1,128], index: 0, kind: input, shape index: {}]
  %s1 = inlined_call_operand.vmem [shape: f32[64,8], index: 1, kind: input, shape index: {}]
  %s2 = inlined_call_operand.vmem [shape: f32[32,64], index: 2, kind: input, shape index: {}]
  %s3 = inlined_call_operand.vmem [shape: f32[32,1], index: 3, kind: input, shape index: {}]
  %s4 = inlined_call_operand.vmem [shape: f32[1,32], index: 4, kind: input, shape index: {}]
  %s5 = inlined_call_operand.<no memory space> [shape: f32[1,1], index: 5, kind: input, shape index: {}]
  %s6 = inlined_call_operand.hbm [shape: f32[1,128], index: 6, kind: output, shape index: {}]
  %s7 = sld [smem:[#allocation0]]
  $region34: #{tpu_custom_call.1} parent=0
    _
  %s9 = ssub.s32 1, %s7
  %s10 = scalar_select 0, %s9, %s7
  %v11 = vstv %s5
  %12 = vst [vmem:[#allocation2] sm:$0x1] %v11
  $region1: #{tpu_custom_call.1} parent=0
    #allocation3 [shape = 'u8[512]{0}', space=vmem, size = 0x400, scoped, tag = 'output window, operand 0, single buffered']
    #allocation4 [shape = 's32[1]{0}', space=sflag, size = 0x4, scoped, tag = 'scoped memory for tpu_custom_call.1']
    %13 = vsyncpa [#allocation4], 0
    // Predicated region
    $region2: #{tpu_custom_call.1} parent=1 // pred_check
      _
    $region3: #{tpu_custom_call.1} parent=1 // pred_check_branch
      %15 = sbr.rel (0) target = $region5
    $region4: #{tpu_custom_call.1} parent=1 // pred_region
      _
    $region5: #{tpu_custom_call.1} parent=1 // pred_fallthru
      _
    // Predicated region
    $region6: #{tpu_custom_call.1} parent=1 // pred_check
      _
    $region7: #{tpu_custom_call.1} parent=1 // pred_check_branch
      %17 = sbr.rel (0) target = $region9
    $region8: #{tpu_custom_call.1} parent=1 // pred_region
      _
    $region9: #{tpu_custom_call.1} parent=1 // pred_fallthru
      _
    // Predicated region
    $region10: #{tpu_custom_call.1} parent=1 // pred_check
      _
    $region11: #{tpu_custom_call.1} parent=1 // pred_check_branch
      %19 = sbr.rel (0) target = $region13
    $region12: #{tpu_custom_call.1} parent=1 // pred_region
      _
    $region13: #{tpu_custom_call.1} parent=1 // pred_fallthru
      _
    // Predicated region
    $region14: #{tpu_custom_call.1} parent=1 // pred_check
      _
    $region15: #{tpu_custom_call.1} parent=1 // pred_check_branch
      %21 = sbr.rel (0) target = $region17
    $region16: #{tpu_custom_call.1} parent=1 // pred_region
      _
    $region17: #{tpu_custom_call.1} parent=1 // pred_fallthru
      _
    // Predicated region
    $region18: #{tpu_custom_call.1} parent=1 // pred_check
      _
    $region19: #{tpu_custom_call.1} parent=1 // pred_check_branch
      %23 = sbr.rel (0) target = $region21
    $region20: #{tpu_custom_call.1} parent=1 // pred_region
      _
    $region21: #{tpu_custom_call.1} parent=1 // pred_fallthru
      _
    // Predicated region
    $region22: #{tpu_custom_call.1} parent=1 // pred_check
      _
    $region23: #{tpu_custom_call.1} parent=1 // pred_check_branch
      %25 = sbr.rel (0) target = $region25
    $region24: #{tpu_custom_call.1} parent=1 // pred_region
      _
    $region25: #{tpu_custom_call.1} parent=1 // pred_fallthru
      _
    %v26 = vld [vmem:[%s0] sm:$0x1]
    %v27 = vand.u32 %v26, 65535
    %v28 = vshra.s32 %v26, 16
    %v29 = vadd.s32 %v28, 5
    %v30 = vlaneseq
    %v31 = vshrl.u32 %v30, 7
    %v32 = vlaneseq
    %v33 = vshrl.u32 %v32, 7
    %v34 = vsub.s32 0, %v33
    %v35 = vrot.slane %v27, %v34
    %vm36 = vcmp.eq.s32.totalorder %v31, %v35
    %v37 = vlaneseq
    %v38 = vshrl.u32 %v37, 7
    %v39 = vsub.s32 0, %v38
    %v40 = vrot.slane %v29, %v39
    %vm41 = vcmp.eq.s32.totalorder %v31, %v40
    %vm42 = vmor %vm36, %vm41
    %v43 = vsel %vm42, 1, 0
    %v44 = vcvt.s32.f32 %v43
    %v45 = vld [vmem:[%s1] sm:$0xff]
    %v46 = vld [vmem:[%s1 + $0x8] sm:$0xff]
    %v47 = vld [vmem:[%s1 + $0x10] sm:$0xff]
    %v48 = vld [vmem:[%s1 + $0x18] sm:$0xff]
    %v49 = vld [vmem:[%s1 + $0x20] sm:$0xff]
    %v50 = vld [vmem:[%s1 + $0x28] sm:$0xff]
    %v51 = vld [vmem:[%s1 + $0x30] sm:$0xff]
    %v52 = vld [vmem:[%s1 + $0x38] sm:$0xff]
    %vm53 = vcmask 64512
    %v55 = vsel %vm53, %v45, 0
    %v58 = vsel %vm53, %v46, 0
    %v61 = vsel %vm53, %v47, 0
    %v64 = vsel %vm53, %v48, 0
    %v67 = vsel %vm53, %v49, 0
    %v70 = vsel %vm53, %v50, 0
    %v73 = vsel %vm53, %v51, 0
    %v76 = vsel %vm53, %v52, 0
    %78 = vmatprep.subr.mxu0 0.0
    %79 = vmatpush1.msra.mxu0 %v44
    %80 = vmatprep.subr.mxu0 0.0
    %81 = vmatpush1.msra.mxu0 0.0
    %82 = vmatprep.subr.mxu0 0.0
    %83 = vmatpush1.msra.mxu0 0.0
    %84 = vmatprep.subr.mxu0 0.0
    %85 = vmatpush1.msra.mxu0 0.0
    %86 = vmatprep.subr.mxu0 0.0
    %87 = vmatpush1.msra.mxu0 0.0
    %88 = vmatprep.subr.mxu0 0.0
    %89 = vmatpush1.msra.mxu0 0.0
    %90 = vmatprep.subr.mxu0 0.0
    %91 = vmatpush1.msra.mxu0 0.0
    %92 = vmatprep.subr.mxu0 0.0
    %93 = vmatpush1.msra.mxu0 0.0
    %94 = vmatprep.subr.mxu0 0.0
    %95 = vmatpush1.msra.mxu0 0.0
    %96 = vmatprep.subr.mxu0 0.0
    %97 = vmatpush1.msra.mxu0 0.0
    %98 = vmatprep.subr.mxu0 0.0
    %99 = vmatpush1.msra.mxu0 0.0
    %100 = vmatprep.subr.mxu0 0.0
    %101 = vmatpush1.msra.mxu0 0.0
    %102 = vmatprep.subr.mxu0 0.0
    %103 = vmatpush1.msra.mxu0 0.0
    %104 = vmatprep.subr.mxu0 0.0
    %105 = vmatpush1.msra.mxu0 0.0
    %106 = vmatprep.subr.mxu0 0.0
    %107 = vmatpush1.msra.mxu0 0.0
    %108 = vmatprep.subr.mxu0 0.0
    %109 = vmatpush1.msra.mxu0 0.0
    %110 = vmatprep.subr.mxu0 0.0
    %111 = vmatpush1.msra.mxu0 0.0
    %112 = vmatprep.subr.mxu0 0.0
    %113 = vmatpush1.msra.mxu0 0.0
    %114 = vmatprep.subr.mxu0 0.0
    %115 = vmatpush1.msra.mxu0 0.0
    %116 = vmatprep.subr.mxu0 0.0
    %117 = vmatpush1.msra.mxu0 0.0
    %118 = vmatprep.subr.mxu0 0.0
    %119 = vmatpush1.msra.mxu0 0.0
    %120 = vmatprep.subr.mxu0 0.0
    %121 = vmatpush1.msra.mxu0 0.0
    %122 = vmatprep.subr.mxu0 0.0
    %123 = vmatpush1.msra.mxu0 0.0
    %124 = vmatprep.subr.mxu0 0.0
    %125 = vmatpush1.msra.mxu0 0.0
    %126 = vmatprep.subr.mxu0 0.0
    %127 = vmatpush1.msra.mxu0 0.0
    %128 = vmatprep.subr.mxu0 0.0
    %129 = vmatpush1.msra.mxu0 0.0
    %130 = vmatprep.subr.mxu0 0.0
    %131 = vmatpush1.msra.mxu0 0.0
    %132 = vmatprep.subr.mxu0 0.0
    %133 = vmatpush1.msra.mxu0 0.0
    %134 = vmatprep.subr.mxu0 0.0
    %135 = vmatpush1.msra.mxu0 0.0
    %136 = vmatprep.subr.mxu0 0.0
    %137 = vmatpush1.msra.mxu0 0.0
    %138 = vmatprep.subr.mxu0 0.0
    %139 = vmatpush1.msra.mxu0 0.0
    %140 = vmatprep.subr.mxu0 0.0
    %141 = vmatpush1.msra.mxu0 0.0
    %142 = vmatprep.mubr.f32.mxu0 0.0
    %143 = vmatmul.mubr.f32.gmra.mrb[0].mxu0 %v55
    %v144 = vpop.f32.mrb[0].mxu0
    %v145 = vadd.f32 0.0, %v144
    %v146 = vpop.f32.mrb[0].mxu0
    %147 = vmatprep.mubr.f32.mxu0 0.0
    %148 = vmatmul.mubr.f32.gmra.mrb[0].mxu0 %v58
    %v149 = vpop.f32.mrb[0].mxu0
    %v150 = vadd.f32 0.0, %v149
    %v151 = vpop.f32.mrb[0].mxu0
    %152 = vmatprep.mubr.f32.mxu0 0.0
    %153 = vmatmul.mubr.f32.gmra.mrb[0].mxu0 %v61
    %v154 = vpop.f32.mrb[0].mxu0
    %v155 = vadd.f32 0.0, %v154
    %v156 = vpop.f32.mrb[0].mxu0
    %157 = vmatprep.mubr.f32.mxu0 0.0
    %158 = vmatmul.mubr.f32.gmra.mrb[0].mxu0 %v64
    %v159 = vpop.f32.mrb[0].mxu0
    %v160 = vadd.f32 0.0, %v159
    %v161 = vpop.f32.mrb[0].mxu0
    %162 = vmatprep.mubr.f32.mxu0 0.0
    %163 = vmatmul.mubr.f32.gmra.mrb[0].mxu0 %v67
    %v164 = vpop.f32.mrb[0].mxu0
    %v165 = vadd.f32 0.0, %v164
    %v166 = vpop.f32.mrb[0].mxu0
    %167 = vmatprep.mubr.f32.mxu0 0.0
    %168 = vmatmul.mubr.f32.gmra.mrb[0].mxu0 %v70
    %v169 = vpop.f32.mrb[0].mxu0
    %v170 = vadd.f32 0.0, %v169
    %v171 = vpop.f32.mrb[0].mxu0
    %172 = vmatprep.mubr.f32.mxu0 0.0
    %173 = vmatmul.mubr.f32.gmra.mrb[0].mxu0 %v73
    %v174 = vpop.f32.mrb[0].mxu0
    %v175 = vadd.f32 0.0, %v174
    %v176 = vpop.f32.mrb[0].mxu0
    %177 = vmatprep.mubr.f32.mxu0 0.0
    %178 = vmatmul.mubr.f32.gmra.mrb[0].mxu0 %v76
    %v179 = vpop.f32.mrb[0].mxu0
    %v180 = vadd.f32 0.0, %v179
    %v181 = vpop.f32.mrb[0].mxu0
    %182 = vdwg.mxu0
    %v183 = vmax.f32 %v145, 0.0
    %v184 = vmax.f32 %v150, 0.0
    %v185 = vmax.f32 %v155, 0.0
    %v186 = vmax.f32 %v160, 0.0
    %v187 = vmax.f32 %v165, 0.0
    %v188 = vmax.f32 %v170, 0.0
    %v189 = vmax.f32 %v175, 0.0
    %v190 = vmax.f32 %v180, 0.0
    %v191 = vld [vmem:[%s2] sm:$0xff]
    %v192 = vld [vmem:[%s2 + $0x8] sm:$0xff]
    %v193 = vld [vmem:[%s2 + $0x10] sm:$0xff]
    %v194 = vld [vmem:[%s2 + $0x18] sm:$0xff]
    %v195 = vld [vmem:[%s3] sm:$0xff]
    %v196 = vld [vmem:[%s3 + $0x8] sm:$0xff]
    %v197 = vld [vmem:[%s3 + $0x10] sm:$0xff]
    %v198 = vld [vmem:[%s3 + $0x18] sm:$0xff]
    %200 = vset.pattern.permute.xlu0 0
    %201 = vperm.xlu0 %200, %v195
    %v202 = vpop.permute.xlu0 %201
    %205 = vset.pattern.permute.xlu0 0
    %206 = vperm.xlu0 %205, %v196
    %v207 = vpop.permute.xlu0 %206
    %210 = vset.pattern.permute.xlu0 0
    %211 = vperm.xlu0 %210, %v197
    %v212 = vpop.permute.xlu0 %211
    %215 = vset.pattern.permute.xlu0 0
    %216 = vperm.xlu0 %215, %v198
    %v217 = vpop.permute.xlu0 %216
    %vm219 = vcmask 523264
    %v221 = vsel %vm219, %v191, 0
    %v224 = vsel %vm219, %v192, 0
    %v227 = vsel %vm219, %v193, 0
    %v230 = vsel %vm219, %v194, 0
    %232 = vmatprep.subr.mxu0 0.0
    %233 = vmatpush1.msra.mxu0 %v183
    %234 = vmatprep.subr.mxu0 0.0
    %235 = vmatpush1.msra.mxu0 %v184
    %236 = vmatprep.subr.mxu0 0.0
    %237 = vmatpush1.msra.mxu0 %v185
    %238 = vmatprep.subr.mxu0 0.0
    %239 = vmatpush1.msra.mxu0 %v186
    %240 = vmatprep.subr.mxu0 0.0
    %241 = vmatpush1.msra.mxu0 %v187
    %242 = vmatprep.subr.mxu0 0.0
    %243 = vmatpush1.msra.mxu0 %v188
    %244 = vmatprep.subr.mxu0 0.0
    %245 = vmatpush1.msra.mxu0 %v189
    %246 = vmatprep.subr.mxu0 0.0
    %247 = vmatpush1.msra.mxu0 %v190
    %248 = vmatprep.subr.mxu0 0.0
    %249 = vmatpush1.msra.mxu0 0.0
    %250 = vmatprep.subr.mxu0 0.0
    %251 = vmatpush1.msra.mxu0 0.0
    %252 = vmatprep.subr.mxu0 0.0
    %253 = vmatpush1.msra.mxu0 0.0
    %254 = vmatprep.subr.mxu0 0.0
    %255 = vmatpush1.msra.mxu0 0.0
    %256 = vmatprep.subr.mxu0 0.0
    %257 = vmatpush1.msra.mxu0 0.0
    %258 = vmatprep.subr.mxu0 0.0
    %259 = vmatpush1.msra.mxu0 0.0
    %260 = vmatprep.subr.mxu0 0.0
    %261 = vmatpush1.msra.mxu0 0.0
    %262 = vmatprep.subr.mxu0 0.0
    %263 = vmatpush1.msra.mxu0 0.0
    %264 = vmatprep.subr.mxu0 0.0
    %265 = vmatpush1.msra.mxu0 0.0
    %266 = vmatprep.subr.mxu0 0.0
    %267 = vmatpush1.msra.mxu0 0.0
    %268 = vmatprep.subr.mxu0 0.0
    %269 = vmatpush1.msra.mxu0 0.0
    %270 = vmatprep.subr.mxu0 0.0
    %271 = vmatpush1.msra.mxu0 0.0
    %272 = vmatprep.subr.mxu0 0.0
    %273 = vmatpush1.msra.mxu0 0.0
    %274 = vmatprep.subr.mxu0 0.0
    %275 = vmatpush1.msra.mxu0 0.0
    %276 = vmatprep.subr.mxu0 0.0
    %277 = vmatpush1.msra.mxu0 0.0
    %278 = vmatprep.subr.mxu0 0.0
    %279 = vmatpush1.msra.mxu0 0.0
    %280 = vmatprep.subr.mxu0 0.0
    %281 = vmatpush1.msra.mxu0 0.0
    %282 = vmatprep.subr.mxu0 0.0
    %283 = vmatpush1.msra.mxu0 0.0
    %284 = vmatprep.subr.mxu0 0.0
    %285 = vmatpush1.msra.mxu0 0.0
    %286 = vmatprep.subr.mxu0 0.0
    %287 = vmatpush1.msra.mxu0 0.0
    %288 = vmatprep.subr.mxu0 0.0
    %289 = vmatpush1.msra.mxu0 0.0
    %290 = vmatprep.subr.mxu0 0.0
    %291 = vmatpush1.msra.mxu0 0.0
    %292 = vmatprep.subr.mxu0 0.0
    %293 = vmatpush1.msra.mxu0 0.0
    %294 = vmatprep.subr.mxu0 0.0
    %295 = vmatpush1.msra.mxu0 0.0
    %296 = vmatprep.mubr.f32.mxu0 0.0
    %297 = vmatmul.mubr.f32.gmra.mrb[0].mxu0 %v221
    %v298 = vpop.f32.mrb[0].mxu0
    %v299 = vadd.f32 %v202, %v298
    %v300 = vpop.f32.mrb[0].mxu0
    %301 = vmatprep.mubr.f32.mxu0 0.0
    %302 = vmatmul.mubr.f32.gmra.mrb[0].mxu0 %v224
    %v303 = vpop.f32.mrb[0].mxu0
    %v304 = vadd.f32 %v207, %v303
    %v305 = vpop.f32.mrb[0].mxu0
    %306 = vmatprep.mubr.f32.mxu0 0.0
    %307 = vmatmul.mubr.f32.gmra.mrb[0].mxu0 %v227
    %v308 = vpop.f32.mrb[0].mxu0
    %v309 = vadd.f32 %v212, %v308
    %v310 = vpop.f32.mrb[0].mxu0
    %311 = vmatprep.mubr.f32.mxu0 0.0
    %312 = vmatmul.mubr.f32.gmra.mrb[0].mxu0 %v230
    %v313 = vpop.f32.mrb[0].mxu0
    %v314 = vadd.f32 %v217, %v313
    %v315 = vpop.f32.mrb[0].mxu0
    %316 = vdwg.mxu0
    %v317 = vmax.f32 %v299, 0.0
    %v318 = vmax.f32 %v304, 0.0
    %v319 = vmax.f32 %v309, 0.0
    %v320 = vmax.f32 %v314, 0.0
    %v321 = vld [vmem:[%s4] sm:$0x1]
    %v322 = vld [vmem:[#allocation2] sm:$0x1]
    %324 = vset.pattern.permute.xlu0 0
    %325 = vperm.xlu0 %324, %v322
    %v326 = vpop.permute.xlu0 %325
    %v328 = vlaneseq
    %v329 = vshrl.u32 %v328, 7
    %v330 = vsub.s32 0, %v329
    %v331 = vrot.slane %v326, %v330
    %vm332 = vcmask 261120
    %v334 = vsel %vm332, %v321, 0
    %336 = vmatprep.subr.mxu0 0.0
    %337 = vmatpush1.msra.mxu0 %v317
    %338 = vmatprep.subr.mxu0 0.0
    %339 = vmatpush1.msra.mxu0 %v318
    %340 = vmatprep.subr.mxu0 0.0
    %341 = vmatpush1.msra.mxu0 %v319
    %342 = vmatprep.subr.mxu0 0.0
    %343 = vmatpush1.msra.mxu0 %v320
    %344 = vmatprep.subr.mxu0 0.0
    %345 = vmatpush1.msra.mxu0 0.0
    %346 = vmatprep.subr.mxu0 0.0
    %347 = vmatpush1.msra.mxu0 0.0
    %348 = vmatprep.subr.mxu0 0.0
    %349 = vmatpush1.msra.mxu0 0.0
    %350 = vmatprep.subr.mxu0 0.0
    %351 = vmatpush1.msra.mxu0 0.0
    %352 = vmatprep.subr.mxu0 0.0
    %353 = vmatpush1.msra.mxu0 0.0
    %354 = vmatprep.subr.mxu0 0.0
    %355 = vmatpush1.msra.mxu0 0.0
    %356 = vmatprep.subr.mxu0 0.0
    %357 = vmatpush1.msra.mxu0 0.0
    %358 = vmatprep.subr.mxu0 0.0
    %359 = vmatpush1.msra.mxu0 0.0
    %360 = vmatprep.subr.mxu0 0.0
    %361 = vmatpush1.msra.mxu0 0.0
    %362 = vmatprep.subr.mxu0 0.0
    %363 = vmatpush1.msra.mxu0 0.0
    %364 = vmatprep.subr.mxu0 0.0
    %365 = vmatpush1.msra.mxu0 0.0
    %366 = vmatprep.subr.mxu0 0.0
    %367 = vmatpush1.msra.mxu0 0.0
    %368 = vmatprep.subr.mxu0 0.0
    %369 = vmatpush1.msra.mxu0 0.0
    %370 = vmatprep.subr.mxu0 0.0
    %371 = vmatpush1.msra.mxu0 0.0
    %372 = vmatprep.subr.mxu0 0.0
    %373 = vmatpush1.msra.mxu0 0.0
    %374 = vmatprep.subr.mxu0 0.0
    %375 = vmatpush1.msra.mxu0 0.0
    %376 = vmatprep.subr.mxu0 0.0
    %377 = vmatpush1.msra.mxu0 0.0
    %378 = vmatprep.subr.mxu0 0.0
    %379 = vmatpush1.msra.mxu0 0.0
    %380 = vmatprep.subr.mxu0 0.0
    %381 = vmatpush1.msra.mxu0 0.0
    %382 = vmatprep.subr.mxu0 0.0
    %383 = vmatpush1.msra.mxu0 0.0
    %384 = vmatprep.subr.mxu0 0.0
    %385 = vmatpush1.msra.mxu0 0.0
    %386 = vmatprep.subr.mxu0 0.0
    %387 = vmatpush1.msra.mxu0 0.0
    %388 = vmatprep.subr.mxu0 0.0
    %389 = vmatpush1.msra.mxu0 0.0
    %390 = vmatprep.subr.mxu0 0.0
    %391 = vmatpush1.msra.mxu0 0.0
    %392 = vmatprep.subr.mxu0 0.0
    %393 = vmatpush1.msra.mxu0 0.0
    %394 = vmatprep.subr.mxu0 0.0
    %395 = vmatpush1.msra.mxu0 0.0
    %396 = vmatprep.subr.mxu0 0.0
    %397 = vmatpush1.msra.mxu0 0.0
    %398 = vmatprep.subr.mxu0 0.0
    %399 = vmatpush1.msra.mxu0 0.0
    %400 = vmatprep.mubr.f32.mxu0 0.0
    %401 = vmatmul.mubr.f32.gmra.mrb[0].mxu0 %v334
    %v402 = vpop.f32.mrb[0].mxu0
    %v403 = vadd.f32 %v331, %v402
    %v404 = vpop.f32.mrb[0].mxu0
    %405 = vdwg.mxu0
    %406 = vst [vmem:[#allocation3] sm:$0x1] %v403
    // Predicated region
    $region26: #{tpu_custom_call.1} parent=1 // pred_check
      _
    $region27: #{tpu_custom_call.1} parent=1 // pred_check_branch
      %408 = sbr.rel (0) target = $region29
    $region28: #{tpu_custom_call.1} parent=1 // pred_region
      %s410 = ssub.s32 16, 16
      %411 = vsyncadd [#allocation4], %s410
      %s413 = sshll.u32 [#allocation3], 4
      %s414 = int_to_ptr.vmem [resolvable:$true] %s413
      %416 = dma.vmem_to_hbm [thread:$0]  %s414, 16, %s6, [#allocation4]
    $region29: #{tpu_custom_call.1} parent=1 // pred_fallthru
      _
    // Predicated region
    $region30: #{tpu_custom_call.1} parent=1 // pred_check
      _
    $region31: #{tpu_custom_call.1} parent=1 // pred_check_branch
      %418 = sbr.rel (0) target = $region33
    $region32: #{tpu_custom_call.1} parent=1 // pred_region
      %419 = dma.done [#allocation4], 16
    $region33: #{tpu_custom_call.1} parent=1 // pred_fallthru
      _
    %420 = vsyncpa [#allocation4], 1

</llo_original>
